<compile_context>
chip_gen: v7x
topology: tpu7x:2x2x1
jax: 0.10.0
libtpu: 0.0.40
codegen_flags: <defaults>
</compile_context>

<pallas_src>
import functools
import math

import numpy as np
import jax
import jax.numpy as jnp
from jax import lax
from jax.experimental import pallas as pl
from jax.experimental.pallas import tpu as pltpu


def _agg_exp_gamma_kernel(x_ref, c_ref, l_ref, out_ref, *,
                          gamma, alpha, eps, n_valid, block_cols, ragged):
    """x_ref: (D, TN) embeddings block in the native (D, N) layout (TN whole tuples).
    c_ref: (TN, TN) bf16 pairing matrix (resident across the grid: constant index map).
    l_ref: (1, TN) labels in {1, 0, -1}; -1 marks anchors and padded lanes.
    out_ref: (1, TN) per-column losses (lane-dense), written once per block."""
    xb = x_ref[...].astype(jnp.bfloat16)                      # bf16 MXU operand

    if ragged:
        # Zero the columns past the real data in the (partial) last block so
        # stale VMEM contents cannot contaminate valid columns (0*NaN == NaN).
        lane = lax.broadcasted_iota(jnp.int32, xb.shape, 1)
        limit = n_valid - pl.program_id(0) * block_cols       # >= TN for non-last blocks
        xb = jnp.where(lane < limit, xb, 0)

    # (a - p) for every non-anchor column in one MXU pass; exact in the f32
    # accumulator because C entries are 0 / +-1.
    dif = jnp.dot(xb, c_ref[...], preferred_element_type=jnp.float32)   # (D, TN)
    e = dif + eps                                             # cirtorch-style (dif + eps)^2
    sq = e * e
    ones = jnp.ones((1, x_ref.shape[0]), jnp.float32)
    d2 = jnp.dot(ones, sq, preferred_element_type=jnp.float32)          # MXU D-reduction
    d = jnp.sqrt(d2)                                          # (1, TN), lane-dense

    lbl = l_ref[...]                                          # (1, TN)
    # One transcendental per column: positives use alpha*d, negatives -gamma*d.
    ex = jnp.exp(jnp.where(lbl > 0.5, alpha * d, -gamma * d))
    # True select: anchors / padded lanes (-1) produce exactly 0.0 (NaN-safe).
    out_ref[...] = jnp.where(lbl > 0.5, ex - 1.0,
                             jnp.where(lbl > -0.5, ex, 0.0))


def _vmem_budget_bytes():
    """Per-generation scoped-VMEM budget (v5e/v6e: 128 MiB physical, v7x: 64 MiB)."""
    try:
        info = pltpu.get_tpu_info()
        cap = int(getattr(info, "vmem_capacity_bytes", 0)) or 64 * 1024 * 1024
    except Exception:
        cap = 64 * 1024 * 1024
    return int(min(max(cap // 2, 32 * 1024 * 1024), 64 * 1024 * 1024))


def _choose_tn(n_cols, d, s, itemsize, vmem_budget):
    """Columns per block: whole tuples, lane-aligned (multiple of 128) or full width."""
    base = s * (128 // math.gcd(s, 128))          # lcm(s, 128): lane- and tuple-aligned

    def vmem_est(tn):
        # double-buffered input block + in-kernel bf16 copy + f32 dif / squares
        # + (double-buffered) bf16 pairing matrix.
        return tn * d * (2 * itemsize + 2 + 4 + 4) + 4 * tn * tn

    if n_cols <= max(base, 768) and (n_cols <= base or vmem_est(n_cols) <= vmem_budget):
        return n_cols                              # one full-width block (always legal)

    tn = base
    # Grow toward ~512 columns (keeps the C-matmul MXU work below the HBM
    # roofline on v5e too), keep >= 2 blocks so v7x's 2 TCs both get work,
    # and stay inside the per-generation VMEM budget.
    while (tn + base <= 512
           and 2 * (tn + base) <= n_cols
           and vmem_est(tn + base) <= vmem_budget):
        tn += base
    return min(tn, n_cols)


def _pallas_agg_exp_gamma_loss(x, label_np, s, *, gamma, alpha, eps):
    """x: (D, N) embeddings in native layout (anchor at columns ::s).
    label_np: length-N numpy labels.  Returns the scalar aggregate loss."""
    d_, n = x.shape
    if s <= 1:                                     # no pairs -> no loss
        return jnp.float32(0.0)

    budget = _vmem_budget_bytes()
    tn = _choose_tn(n, d_, s, x.dtype.itemsize, budget)
    nblocks = pl.cdiv(n, tn)
    n_pad = nblocks * tn
    ragged = (n % tn) != 0

    # Constant pairing matrix: column j = e_anchor(j) - e_j (zero for anchors), so
    # (X_block @ C)[:, j] = x_anchor(j) - x_j.  Same matrix for every block since
    # TN is a multiple of S (blocks are tuple-aligned).  Entries 0/+-1 -> exact bf16.
    c_np = np.zeros((tn, tn), np.float32)
    for t in range(tn // s):
        a0 = t * s
        for k in range(1, s):
            c_np[a0, a0 + k] = 1.0
            c_np[a0 + k, a0 + k] = -1.0
    c = jnp.asarray(c_np, jnp.bfloat16)

    # Pad only the (tiny) label row; padded lanes get -1 -> masked to exactly 0.
    lbl_np = np.full((1, n_pad), -1.0, np.float32)
    lbl_np[0, :n] = np.asarray(label_np, np.float32)
    lbl = jnp.asarray(lbl_np)

    kernel = functools.partial(
        _agg_exp_gamma_kernel,
        gamma=float(gamma), alpha=float(alpha), eps=float(eps),
        n_valid=int(n), block_cols=int(tn), ragged=bool(ragged),
    )
    per_col = pl.pallas_call(
        kernel,
        out_shape=jax.ShapeDtypeStruct((1, n_pad), jnp.float32),
        grid=(nblocks,),
        in_specs=[
            # embeddings, native (D, N) layout: lane-dense column blocks, read once.
            pl.BlockSpec((d_, tn), lambda i: (0, i)),
            # pairing matrix: constant index map -> fetched once, resident in VMEM.
            pl.BlockSpec((tn, tn), lambda i: (0, 0)),
            # labels (lane-dense).
            pl.BlockSpec((1, tn), lambda i: (0, i)),
        ],
        out_specs=pl.BlockSpec((1, tn), lambda i: (0, i)),
        compiler_params=pltpu.CompilerParams(
            dimension_semantics=("parallel",),
            vmem_limit_bytes=budget,
        ),
    )(x, c, lbl)

    return jnp.sum(per_col)     # tiny final reduce over per-column partials


class MyAggregateExponentialGammaLoss:
    """JAX/Pallas port of the PyTorch module's forward pass."""

    def __init__(self, alpha=1.0, gamma=0.8, drop_loss=0, drop_loss_freq=0, eps=1e-6):
        self.gamma = gamma
        self.alpha = alpha
        self.drop_loss = drop_loss
        self.drop_loss_freq = drop_loss_freq
        self.eps = eps
        self.count = 0
        self.idx = None
        print('Creating myAggExpGammaLoss with gamma: {}, alpha: {}'.format(
            self.gamma, self.alpha))

    def forward(self, x, label, avgPosDist=None, avgNegDist=None, Lw=None):
        x = jnp.asarray(x)
        if not jnp.issubdtype(x.dtype, jnp.floating):
            x = x.astype(jnp.float32)      # f32/bf16 inputs pass through untouched
        label_np = np.asarray(label)

        # Stateful random feature-row dropping (host-side mask, as in the torch module).
        # TODO(synk): torch.rand replaced by host-side numpy RNG (not bit-identical).
        update_dropped = False
        if self.drop_loss_freq:
            if self.count % self.drop_loss_freq == 0:
                update_dropped = True
                self.count = 0
        self.count += 1
        if self.drop_loss > 0:
            if update_dropped or self.idx is None:
                self.idx = np.flatnonzero(np.random.rand(int(x.shape[0])) > self.drop_loss)
            x = x[jnp.asarray(self.idx, dtype=jnp.int32)]

        if Lw is not None:                 # optional whitening (plain-JAX glue)
            x = jnp.dot(jnp.asarray(Lw['P'], jnp.float32),
                        x.astype(jnp.float32) - jnp.asarray(Lw['m'], jnp.float32))

        n = int(x.shape[1])
        nq = int(np.sum(label_np == -1))   # number of tuples (anchors)
        s = n // nq                        # images per tuple (anchor + S-1 pairs)
        assert np.all(label_np.reshape(nq, s)[:, 0] == -1), \
            'cirtorch tuple convention: anchors must sit at columns ::S'

        # x stays in its native (D, N) layout: no transpose, no pad copies.
        return _pallas_agg_exp_gamma_loss(
            x, label_np, s, gamma=self.gamma, alpha=self.alpha, eps=self.eps)

    __call__ = forward


def _ref_loss(x, label_np, alpha, gamma, eps):
    """Pure-JAX f32 reference (original repeat/gather formulation)."""
    dim, n = x.shape
    nq = int(np.sum(label_np == -1))
    s = n // nq
    xt = x.astype(jnp.float32).T
    x1 = jnp.repeat(xt[::s], s - 1, axis=0)
    idx = np.array([i for i in range(n) if label_np[i] != -1], dtype=np.int32)
    x2 = xt[idx]
    lbl = jnp.asarray(label_np[idx], jnp.float32).reshape(-1, 1)
    d = jnp.sqrt(jnp.sum((x1 - x2 + eps) ** 2, axis=1, keepdims=True))
    return jnp.sum(lbl * (jnp.exp(alpha * d) - 1.0) + (1.0 - lbl) * jnp.exp(-gamma * d))


if __name__ == "__main__":
    key = jax.random.PRNGKey(0)
    k1, k2 = jax.random.split(key)

    loss_mod = MyAggregateExponentialGammaLoss(alpha=1.0, gamma=0.8, eps=1e-6)

    # --- test 1: tiny batch, single full-width block (TN == N) -----------------
    D, nq, S = 32, 2, 4
    N = nq * S
    x = jax.random.normal(k1, (D, N), dtype=jnp.float32)
    x = x / (jnp.linalg.norm(x, axis=0, keepdims=True) + 1e-6)   # l2-normalized cols
    label = np.tile(np.array([-1, 1, 0, 0], dtype=np.float32), nq)

    loss = loss_mod(x, label)
    jax.block_until_ready(loss)
    ref = _ref_loss(x, label, 1.0, 0.8, 1e-6)
    # in-kernel bf16 MXU operands -> loosened tolerance (per perf review)
    np.testing.assert_allclose(np.asarray(loss), np.asarray(ref), rtol=2e-2, atol=1e-3)

    # --- test 2: multi-block ragged grid (N=1000 -> TN=384, 3 blocks, partial tail) ---
    D2, nq2, S2 = 64, 250, 4
    N2 = nq2 * S2
    x2 = jax.random.normal(k2, (D2, N2), dtype=jnp.float32)
    x2 = x2 / (jnp.linalg.norm(x2, axis=0, keepdims=True) + 1e-6)
    label2 = np.tile(np.array([-1, 1, 0, 0], dtype=np.float32), nq2)

    loss2 = loss_mod(x2, label2)
    jax.block_until_ready(loss2)
    ref2 = _ref_loss(x2, label2, 1.0, 0.8, 1e-6)
    np.testing.assert_allclose(np.asarray(loss2), np.asarray(ref2), rtol=2e-2, atol=1e-2)

    print("KERNEL_OK")
</pallas_src>

<mosaic_0001>
module attributes {stable_mosaic.version = 11 : i64} {
  func.func @_agg_exp_gamma_kernel(%arg0: i32, %arg1: memref<32x8xf32, #tpu.memory_space<vmem>>, %arg2: memref<8x8xbf16, #tpu.memory_space<vmem>>, %arg3: memref<1x8xf32, #tpu.memory_space<vmem>>, %arg4: memref<1x8xf32, #tpu.memory_space<vmem>>) attributes {dimension_semantics = [#tpu.dimension_semantics<parallel>], iteration_bounds = array<i64: 1>, scalar_prefetch = 0 : i64, scratch_operands = 0 : i64, tpu.core_type = #tpu.core_type<tc>, window_params = [{transform_indices = @transform_0, window_bounds = array<i64: 32, 8>}, {pipeline_mode = #tpu.pipeline_mode<synchronous>, transform_indices = @transform_1, window_bounds = array<i64: 8, 8>}, {transform_indices = @transform_2, window_bounds = array<i64: 1, 8>}, {transform_indices = @transform_3, window_bounds = array<i64: 1, 8>}]} {
    %c0 = arith.constant 0 : index
    %c0_0 = arith.constant 0 : index
    %0 = vector.load %arg1[%c0, %c0_0] : memref<32x8xf32, #tpu.memory_space<vmem>>, vector<32x8xf32>
    %1 = arith.truncf %0 : vector<32x8xf32> to vector<32x8xbf16>
    %c0_1 = arith.constant 0 : index
    %c0_2 = arith.constant 0 : index
    %2 = vector.load %arg2[%c0_1, %c0_2] : memref<8x8xbf16, #tpu.memory_space<vmem>>, vector<8x8xbf16>
    %cst = arith.constant dense<0.000000e+00> : vector<32x8xf32>
    %3 = tpu.matmul %1, %2, %cst {dimension_numbers = #tpu.dot_dimension_numbers<[1], [0], [0], [1], [0, 0, 1, 1], [], []>} : vector<32x8xbf16>, vector<8x8xbf16>, vector<32x8xf32> -> vector<32x8xf32>
    %cst_3 = arith.constant 9.99999997E-7 : f32
    %4 = vector.broadcast %cst_3 : f32 to vector<32x8xf32>
    %5 = arith.addf %3, %4 : vector<32x8xf32>
    %6 = arith.mulf %5, %5 : vector<32x8xf32>
    %cst_4 = arith.constant 1.000000e+00 : f32
    %7 = vector.broadcast %cst_4 : f32 to vector<1x32xf32>
    %cst_5 = arith.constant dense<0.000000e+00> : vector<1x8xf32>
    %8 = tpu.matmul %7, %6, %cst_5 {dimension_numbers = #tpu.dot_dimension_numbers<[1], [0], [0], [1], [0, 0, 1, 1], [], []>} : vector<1x32xf32>, vector<32x8xf32>, vector<1x8xf32> -> vector<1x8xf32>
    %9 = math.sqrt %8 : vector<1x8xf32>
    %c0_6 = arith.constant 0 : index
    %c0_7 = arith.constant 0 : index
    %10 = vector.load %arg3[%c0_6, %c0_7] : memref<1x8xf32, #tpu.memory_space<vmem>>, vector<1x8xf32>
    %cst_8 = arith.constant 5.000000e-01 : f32
    %11 = vector.broadcast %cst_8 : f32 to vector<1x8xf32>
    %12 = arith.cmpf ogt, %10, %11 : vector<1x8xf32>
    %cst_9 = arith.constant 1.000000e+00 : f32
    %13 = vector.broadcast %cst_9 : f32 to vector<1x8xf32>
    %14 = arith.mulf %13, %9 : vector<1x8xf32>
    %cst_10 = arith.constant -8.000000e-01 : f32
    %15 = vector.broadcast %cst_10 : f32 to vector<1x8xf32>
    %16 = arith.mulf %15, %9 : vector<1x8xf32>
    %17 = arith.select %12, %14, %16 : vector<1x8xi1>, vector<1x8xf32>
    %18 = math.exp %17 : vector<1x8xf32>
    %cst_11 = arith.constant 5.000000e-01 : f32
    %19 = vector.broadcast %cst_11 : f32 to vector<1x8xf32>
    %20 = arith.cmpf ogt, %10, %19 : vector<1x8xf32>
    %cst_12 = arith.constant 1.000000e+00 : f32
    %21 = vector.broadcast %cst_12 : f32 to vector<1x8xf32>
    %22 = arith.subf %18, %21 : vector<1x8xf32>
    %cst_13 = arith.constant -5.000000e-01 : f32
    %23 = vector.broadcast %cst_13 : f32 to vector<1x8xf32>
    %24 = arith.cmpf ogt, %10, %23 : vector<1x8xf32>
    %cst_14 = arith.constant 0.000000e+00 : f32
    %25 = vector.broadcast %cst_14 : f32 to vector<1x8xf32>
    %26 = arith.select %24, %18, %25 : vector<1x8xi1>, vector<1x8xf32>
    %27 = arith.select %20, %22, %26 : vector<1x8xi1>, vector<1x8xf32>
    %c0_15 = arith.constant 0 : index
    %c0_16 = arith.constant 0 : index
    %28 = vector.load %arg4[%c0_15, %c0_16] : memref<1x8xf32, #tpu.memory_space<vmem>>, vector<1x8xf32>
    tpu.vector_store %arg4[%c0_15, %c0_16], %27 {strides = array<i32>} : memref<1x8xf32, #tpu.memory_space<vmem>>, vector<1x8xf32>,
    return
  }
  func.func @transform_0(%arg0: i32) -> (i32, i32) {
    %c0_i32 = arith.constant 0 : i32
    %c0_i32_0 = arith.constant 0 : i32
    return %c0_i32, %arg0 : i32, i32
  }
  func.func @transform_1(%arg0: i32) -> (i32, i32) {
    %c0_i32 = arith.constant 0 : i32
    %c0_i32_0 = arith.constant 0 : i32
    %c0_i32_1 = arith.constant 0 : i32
    return %c0_i32, %c0_i32_0 : i32, i32
  }
  func.func @transform_2(%arg0: i32) -> (i32, i32) {
    %c0_i32 = arith.constant 0 : i32
    %c0_i32_0 = arith.constant 0 : i32
    return %c0_i32, %arg0 : i32, i32
  }
  func.func @transform_3(%arg0: i32) -> (i32, i32) {
    %c0_i32 = arith.constant 0 : i32
    %c0_i32_0 = arith.constant 0 : i32
    return %c0_i32, %arg0 : i32, i32
  }
}

</mosaic_0001>

<llo_original>
// kernel: tpu_custom_call.1
$region0: #{tpu_custom_call.1}
  #allocation0 [shape = 'u32[]', space=smem, size = 0x4, offset = 0x4, fixed_abs, tag = 'smem constant byte address 0x4 - core index']
  #allocation1 [shape = 'u32[144,128]{1,0:T(1,128)}', space=vmem, size = 0x12000, scoped, tag = 'internal scratch']
  %s0 = inlined_call_operand.vmem [shape: f32[32,8], index: 0, kind: input, shape index: {}]
  %s1 = inlined_call_operand.vmem [shape: bf16[8,8], index: 1, kind: input, shape index: {}]
  %s2 = inlined_call_operand.vmem [shape: f32[1,8], index: 2, kind: input, shape index: {}]
  %s3 = inlined_call_operand.hbm [shape: f32[1,8], index: 3, kind: output, shape index: {}]
  %s4 = sld [smem:[#allocation0]]
  $region22: #{tpu_custom_call.1} parent=0
    _
  %s6 = ssub.s32 1, %s4
  %s7 = scalar_select 0, %s6, %s4
  $region1: #{tpu_custom_call.1} parent=0
    #allocation2 [shape = 'u8[512]{0}', space=vmem, size = 0x400, scoped, tag = 'output window, operand 0, single buffered']
    #allocation3 [shape = 's32[1]{0}', space=sflag, size = 0x4, scoped, tag = 'scoped memory for tpu_custom_call.1']
    %8 = vsyncpa [#allocation3], 0
    // Predicated region
    $region2: #{tpu_custom_call.1} parent=1 // pred_check
      _
    $region3: #{tpu_custom_call.1} parent=1 // pred_check_branch
      %10 = sbr.rel (0) target = $region5
    $region4: #{tpu_custom_call.1} parent=1 // pred_region
      _
    $region5: #{tpu_custom_call.1} parent=1 // pred_fallthru
      _
    // Predicated region
    $region6: #{tpu_custom_call.1} parent=1 // pred_check
      _
    $region7: #{tpu_custom_call.1} parent=1 // pred_check_branch
      %12 = sbr.rel (0) target = $region9
    $region8: #{tpu_custom_call.1} parent=1 // pred_region
      _
    $region9: #{tpu_custom_call.1} parent=1 // pred_fallthru
      _
    // Predicated region
    $region10: #{tpu_custom_call.1} parent=1 // pred_check
      _
    $region11: #{tpu_custom_call.1} parent=1 // pred_check_branch
      %14 = sbr.rel (0) target = $region13
    $region12: #{tpu_custom_call.1} parent=1 // pred_region
      _
    $region13: #{tpu_custom_call.1} parent=1 // pred_fallthru
      _
    %v16 = vld [vmem:[%s0] sm:$0xff]
    %v17 = vld [vmem:[%s0 + $0x8] sm:$0xff]
    %v18 = vld [vmem:[%s0 + $0x10] sm:$0xff]
    %v19 = vld [vmem:[%s0 + $0x18] sm:$0xff]
    %v20 = vpack.c.bf16 %v17, %v16
    %v21 = vpack.c.bf16 %v19, %v18
    %v22 = vld [vmem:[%s1] sm:$0xf]
    %vm23 = vcmask 64512
    %v25 = vsel %vm23, %v20, 0
    %v28 = vsel %vm23, %v21, 0
    %vm30 = vcmask 1043456
    %v32 = vsel %vm30, %v22, 0
    %34 = vmatprep.subr.bf16.mxu0 0
    %35 = vmatpush1.bf16.msra.mxu0 %v32
    %36 = vmatprep.subr.bf16.mxu0 0
    %37 = vmatpush1.bf16.msra.mxu0 0
    %38 = vmatprep.subr.bf16.mxu0 0
    %39 = vmatpush1.bf16.msra.mxu0 0
    %40 = vmatprep.subr.bf16.mxu0 0
    %41 = vmatpush1.bf16.msra.mxu0 0
    %42 = vmatprep.subr.bf16.mxu0 0
    %43 = vmatpush1.bf16.msra.mxu0 0
    %44 = vmatprep.subr.bf16.mxu0 0
    %45 = vmatpush1.bf16.msra.mxu0 0
    %46 = vmatprep.subr.bf16.mxu0 0
    %47 = vmatpush1.bf16.msra.mxu0 0
    %48 = vmatprep.subr.bf16.mxu0 0
    %49 = vmatpush1.bf16.msra.mxu0 0
    %50 = vmatprep.subr.bf16.mxu0 0
    %51 = vmatpush1.bf16.msra.mxu0 0
    %52 = vmatprep.subr.bf16.mxu0 0
    %53 = vmatpush1.bf16.msra.mxu0 0
    %54 = vmatprep.subr.bf16.mxu0 0
    %55 = vmatpush1.bf16.msra.mxu0 0
    %56 = vmatprep.subr.bf16.mxu0 0
    %57 = vmatpush1.bf16.msra.mxu0 0
    %58 = vmatprep.subr.bf16.mxu0 0
    %59 = vmatpush1.bf16.msra.mxu0 0
    %60 = vmatprep.subr.bf16.mxu0 0
    %61 = vmatpush1.bf16.msra.mxu0 0
    %62 = vmatprep.subr.bf16.mxu0 0
    %63 = vmatpush1.bf16.msra.mxu0 0
    %64 = vmatprep.subr.bf16.mxu0 0
    %65 = vmatpush1.bf16.msra.mxu0 0
    %66 = vmatprep.mubr.bf16.mxu0 0
    %67 = vmatmul.mubr.bf16.gmra.mrb[0].mxu0 %v25
    %v68 = vpop.f32.mrb[0].mxu0
    %v69 = vadd.f32 1e-06, %v68
    %v70 = vpop.f32.mrb[0].mxu0
    %v71 = vpop.f32.mrb[0].mxu0
    %v72 = vadd.f32 1e-06, %v71
    %v73 = vpop.f32.mrb[0].mxu0
    %74 = vmatprep.mubr.bf16.mxu0 0
    %75 = vmatmul.mubr.bf16.gmra.mrb[0].mxu0 %v28
    %v76 = vpop.f32.mrb[0].mxu0
    %v77 = vadd.f32 1e-06, %v76
    %v78 = vpop.f32.mrb[0].mxu0
    %v79 = vpop.f32.mrb[0].mxu0
    %v80 = vadd.f32 1e-06, %v79
    %v81 = vpop.f32.mrb[0].mxu0
    %82 = vdwg.mxu0
    %v83 = vmul.f32 %v69, %v69
    %v84 = vmul.f32 %v72, %v72
    %v85 = vmul.f32 %v77, %v77
    %v86 = vmul.f32 %v80, %v80
    %vm87 = vcmask 261120
    %v89 = vsel %vm87, 1.0, 0
    %91 = vmatprep.subr.mxu0 0.0
    %92 = vmatpush1.msra.mxu0 %v83
    %93 = vmatprep.subr.mxu0 0.0
    %94 = vmatpush1.msra.mxu0 %v84
    %95 = vmatprep.subr.mxu0 0.0
    %96 = vmatpush1.msra.mxu0 %v85
    %97 = vmatprep.subr.mxu0 0.0
    %98 = vmatpush1.msra.mxu0 %v86
    %99 = vmatprep.subr.mxu0 0.0
    %100 = vmatpush1.msra.mxu0 0.0
    %101 = vmatprep.subr.mxu0 0.0
    %102 = vmatpush1.msra.mxu0 0.0
    %103 = vmatprep.subr.mxu0 0.0
    %104 = vmatpush1.msra.mxu0 0.0
    %105 = vmatprep.subr.mxu0 0.0
    %106 = vmatpush1.msra.mxu0 0.0
    %107 = vmatprep.subr.mxu0 0.0
    %108 = vmatpush1.msra.mxu0 0.0
    %109 = vmatprep.subr.mxu0 0.0
    %110 = vmatpush1.msra.mxu0 0.0
    %111 = vmatprep.subr.mxu0 0.0
    %112 = vmatpush1.msra.mxu0 0.0
    %113 = vmatprep.subr.mxu0 0.0
    %114 = vmatpush1.msra.mxu0 0.0
    %115 = vmatprep.subr.mxu0 0.0
    %116 = vmatpush1.msra.mxu0 0.0
    %117 = vmatprep.subr.mxu0 0.0
    %118 = vmatpush1.msra.mxu0 0.0
    %119 = vmatprep.subr.mxu0 0.0
    %120 = vmatpush1.msra.mxu0 0.0
    %121 = vmatprep.subr.mxu0 0.0
    %122 = vmatpush1.msra.mxu0 0.0
    %123 = vmatprep.subr.mxu0 0.0
    %124 = vmatpush1.msra.mxu0 0.0
    %125 = vmatprep.subr.mxu0 0.0
    %126 = vmatpush1.msra.mxu0 0.0
    %127 = vmatprep.subr.mxu0 0.0
    %128 = vmatpush1.msra.mxu0 0.0
    %129 = vmatprep.subr.mxu0 0.0
    %130 = vmatpush1.msra.mxu0 0.0
    %131 = vmatprep.subr.mxu0 0.0
    %132 = vmatpush1.msra.mxu0 0.0
    %133 = vmatprep.subr.mxu0 0.0
    %134 = vmatpush1.msra.mxu0 0.0
    %135 = vmatprep.subr.mxu0 0.0
    %136 = vmatpush1.msra.mxu0 0.0
    %137 = vmatprep.subr.mxu0 0.0
    %138 = vmatpush1.msra.mxu0 0.0
    %139 = vmatprep.subr.mxu0 0.0
    %140 = vmatpush1.msra.mxu0 0.0
    %141 = vmatprep.subr.mxu0 0.0
    %142 = vmatpush1.msra.mxu0 0.0
    %143 = vmatprep.subr.mxu0 0.0
    %144 = vmatpush1.msra.mxu0 0.0
    %145 = vmatprep.subr.mxu0 0.0
    %146 = vmatpush1.msra.mxu0 0.0
    %147 = vmatprep.subr.mxu0 0.0
    %148 = vmatpush1.msra.mxu0 0.0
    %149 = vmatprep.subr.mxu0 0.0
    %150 = vmatpush1.msra.mxu0 0.0
    %151 = vmatprep.subr.mxu0 0.0
    %152 = vmatpush1.msra.mxu0 0.0
    %153 = vmatprep.subr.mxu0 0.0
    %154 = vmatpush1.msra.mxu0 0.0
    %155 = vmatprep.mubr.f32.mxu0 0.0
    %156 = vmatmul.mubr.f32.gmra.mrb[0].mxu0 %v89
    %v157 = vpop.f32.mrb[0].mxu0
    %v158 = vadd.f32 0.0, %v157
    %v159 = vpop.f32.mrb[0].mxu0
    %160 = vdwg.mxu0
    %v161 = vrsqrt.pop %v158
    %v162 = vmul.f32 %v158, %v161
    %vm163 = vcmp.eq.f32.partialorder %v158, inf
    %v164 = vsel %vm163, %v158, %v162
    %vm165 = vcmp.eq.f32.partialorder %v158, 0.0
    %v166 = vand.u32 %v158, 2147483648
    %v167 = vsel %vm165, %v166, %v164
    %v168 = vld [vmem:[%s2] sm:$0x1]
    %vm169 = vcmp.gt.f32.partialorder %v168, 0.5
    %v170 = vmul.f32 %v167, -0.8
    %v171 = vsel %vm169, %v167, %v170
    %v172 = vmul.f32 %v171, 1.442695
    %v173 = vpow.pop %v172
    %v174 = vsub.f32 %v173, 1.0
    %vm175 = vcmp.gt.f32.partialorder %v168, -0.5
    %v176 = vsel %vm175, %v173, 0.0
    %v177 = vsel %vm169, %v174, %v176
    %vm178 = vcmask 57344
    %179 = vst.msk [vmem:[#allocation2] sm:$0x1] %vm178, %v177
    // Predicated region
    $region14: #{tpu_custom_call.1} parent=1 // pred_check
      _
    $region15: #{tpu_custom_call.1} parent=1 // pred_check_branch
      %181 = sbr.rel (0) target = $region17
    $region16: #{tpu_custom_call.1} parent=1 // pred_region
      %s183 = ssub.s32 16, 16
      %184 = vsyncadd [#allocation3], %s183
      %s186 = sshll.u32 [#allocation2], 4
      %s187 = int_to_ptr.vmem [resolvable:$true] %s186
      %189 = dma.vmem_to_hbm [thread:$0]  %s187, 16, %s3, [#allocation3]
    $region17: #{tpu_custom_call.1} parent=1 // pred_fallthru
      _
    // Predicated region
    $region18: #{tpu_custom_call.1} parent=1 // pred_check
      _
    $region19: #{tpu_custom_call.1} parent=1 // pred_check_branch
      %191 = sbr.rel (0) target = $region21
    $region20: #{tpu_custom_call.1} parent=1 // pred_region
      %192 = dma.done [#allocation3], 16
    $region21: #{tpu_custom_call.1} parent=1 // pred_fallthru
      _
    %193 = vsyncpa [#allocation3], 1

</llo_original>
